<compile_context>
chip_gen: v7x
topology: tpu7x:2x2x1
jax: 0.10.0
libtpu: 0.0.40
codegen_flags: <defaults>
</compile_context>

<pallas_src>
import jax
import jax.numpy as jnp
from jax.experimental import pallas as pl
from jax.experimental.pallas import tpu as pltpu


_LANE = 128
_N_DMA_SEM = 8


def _round_up(x, m):
    return ((x + m - 1) // m) * m


def _vmem_cap_bytes():
    """~75% of physical per-core VMEM (headroom for compiler scratch/spill)."""
    try:
        phys = int(pltpu.get_tpu_info().vmem_capacity_bytes)
    except Exception:
        phys = 64 * 1024 * 1024          # conservative fallback: v7x per-TC VMEM
    return phys * 3 // 4


def _pick_token_tile(n_tokens, per_row_bytes, budget_bytes):
    """Largest fixed tile whose per-tile VMEM need fits the budget.

    Never falls back to one unbounded full-extent block; callers pad the
    token count up to a multiple of the tile instead.
    """
    tile = 8
    for t in (1024, 512, 256, 128, 64, 32, 16, 8):
        if t * per_row_bytes <= budget_bytes:
            tile = t
            break
    # Don't over-pad tiny inputs (result is still a multiple of 8).
    return min(tile, _round_up(n_tokens, 8))


# --------------------------- one-hot / MXU path -----------------------------


def _onehot_matmul_body(id_refs, tab_ref, out_ref):
    """out = onehot(ids) @ block_diag_table  (== concat of table gathers)."""
    t_s = id_refs[0].shape[0]
    v_tot = tab_ref.shape[0]
    # One lane-iota reused for every table (JAX does not CSE broadcasted_iota).
    lanes = jax.lax.broadcasted_iota(jnp.int32, (t_s, v_tot), 1)
    hit = lanes == id_refs[0][...]
    for idr in id_refs[1:]:
        hit = hit | (lanes == idr[...])
    onehot = hit.astype(tab_ref.dtype)          # cmp/or + one cast; no select
    out_ref[...] = jnp.dot(
        onehot, tab_ref[...], preferred_element_type=jnp.float32
    ).astype(out_ref.dtype)


def _onehot_kernel_1(i0, tab, out):
    _onehot_matmul_body((i0,), tab, out)


def _onehot_kernel_2(i0, i1, tab, out):
    _onehot_matmul_body((i0, i1), tab, out)


def _onehot_kernel_3(i0, i1, i2, tab, out):
    _onehot_matmul_body((i0, i1, i2), tab, out)


_ONEHOT_KERNELS = {1: _onehot_kernel_1, 2: _onehot_kernel_2, 3: _onehot_kernel_3}


def _build_block_table(tables, d_out_pad, dtype):
    """Stack tables block-diagonally: row slabs lane-aligned (128) per table,
    columns packed contiguously in concat order.  Returns (table, row_offs)."""
    row_offs, col_offs = [], []
    r = c = 0
    for t in tables:
        row_offs.append(r)
        col_offs.append(c)
        r += _round_up(t.shape[0], _LANE)
        c += t.shape[1]
    blk = jnp.zeros((r, d_out_pad), dtype)
    for t, ro, co in zip(tables, row_offs, col_offs):
        blk = blk.at[ro:ro + t.shape[0], co:co + t.shape[1]].set(t.astype(dtype))
    return blk, row_offs


def _onehot_plan(n_tokens, v_tot, d_pad, n_id_cols):
    """Token tile + vmem_limit for the one-hot path (generation-aware).

    With dimension_semantics=("parallel",) every TensorCore holds its own
    full copy of the resident table, so the per-core cap must cover the whole
    table, not half of it.
    """
    cap = _vmem_cap_bytes()
    table_bytes = v_tot * d_pad * 4                     # Buffered(1): one copy
    per_row = 4 * (2 * v_tot                            # one-hot + cmp temps
                   + 2 * d_pad                          # double-buffered out
                   + 2 * n_id_cols * _LANE)             # double-buffered ids
    budget = max(cap - table_bytes - (2 << 20), 8 * per_row)
    t_s = _pick_token_tile(n_tokens, per_row, budget)
    need = table_bytes + t_s * per_row
    vmem_limit = int(min(cap, max(32 << 20, need * 3 // 2)))
    return t_s, vmem_limit


def _pad_id_col(ids_col, n_pad):
    n = ids_col.shape[0]
    if n == n_pad:
        return ids_col
    return jnp.pad(ids_col, ((0, n_pad - n), (0, 0)))   # pad rows gather row 0


def _gather_concat_onehot(id_cols, block_table, t_s, vmem_limit):
    """Concat-of-gathers for id columns already offset into block-table rows.

    id_cols: list of (n_pad, 1) int32.  Returns (n_pad, d_pad) in table dtype.
    """
    n_pad = id_cols[0].shape[0]
    v_tot, d_pad = block_table.shape
    grid = (n_pad // t_s,)

    ids_spec = pl.BlockSpec((t_s, 1), lambda i: (i, 0))
    # Constant index_map -> table is resident; single-buffer it (the default
    # double buffering would just hold two identical copies in VMEM).
    tab_spec = pl.BlockSpec((v_tot, d_pad), lambda i: (0, 0),
                            pipeline_mode=pl.Buffered(1))
    out_spec = pl.BlockSpec((t_s, d_pad), lambda i: (i, 0))   # lane-dense store

    cost = pl.CostEstimate(
        flops=2 * n_pad * v_tot * d_pad,
        transcendentals=0,
        bytes_accessed=(len(id_cols) * n_pad * 4
                        + block_table.size * 4
                        + n_pad * d_pad * 4),
    )
    return pl.pallas_call(
        _ONEHOT_KERNELS[len(id_cols)],
        out_shape=jax.ShapeDtypeStruct((n_pad, d_pad), block_table.dtype),
        grid=grid,
        in_specs=[ids_spec] * len(id_cols) + [tab_spec],
        out_specs=out_spec,
        compiler_params=pltpu.CompilerParams(
            dimension_semantics=("parallel",),
            vmem_limit_bytes=vmem_limit),
        cost_estimate=cost,
    )(*id_cols, block_table)


# ------------------------- large-vocab DMA-gather path ----------------------


def _dma_gather_kernel(ids_ref, tab_hbm, out_ref, sems):
    """out[r, :] = tab_hbm[ids[base + r], :] via pipelined per-row DMAs."""
    t_s = out_ref.shape[0]
    base = pl.program_id(0) * t_s
    n_prime = min(_N_DMA_SEM, t_s)

    def _copy(r, slot):
        return pltpu.make_async_copy(
            tab_hbm.at[ids_ref[base + r]], out_ref.at[r], sems.at[slot])

    @pl.loop(0, n_prime)                      # prime the semaphore ring
    def _(r):
        _copy(r, r % _N_DMA_SEM).start()

    @pl.loop(n_prime, t_s)                    # steady state: retire + reissue
    def _(r):
        _copy(r - n_prime, r % _N_DMA_SEM).wait()
        _copy(r, r % _N_DMA_SEM).start()

    @pl.loop(t_s - n_prime, t_s)              # drain
    def _(r):
        _copy(r, r % _N_DMA_SEM).wait()


def _gather_rows_dma(ids_flat, table, t_s, vmem_limit):
    """table[ids] with the table left in HBM (memory_space=pl.ANY)."""
    n_pad = ids_flat.shape[0]
    _, d = table.shape
    grid_spec = pltpu.PrefetchScalarGridSpec(
        num_scalar_prefetch=1,
        grid=(n_pad // t_s,),
        in_specs=[pl.BlockSpec(memory_space=pl.ANY)],
        out_specs=pl.BlockSpec((t_s, d), lambda i, ids: (i, 0)),
        scratch_shapes=[pltpu.SemaphoreType.DMA((_N_DMA_SEM,))],
    )
    return pl.pallas_call(
        _dma_gather_kernel,
        out_shape=jax.ShapeDtypeStruct((n_pad, d), table.dtype),
        grid_spec=grid_spec,
        compiler_params=pltpu.CompilerParams(
            dimension_semantics=("arbitrary",),
            vmem_limit_bytes=vmem_limit),
    )(ids_flat, table)


def _dma_plan(n_tokens, d):
    cap = _vmem_cap_bytes()
    per_row = 2 * 4 * _round_up(d, _LANE)     # double-buffered output rows
    t_s = _pick_token_tile(n_tokens, per_row, cap // 4)
    vmem_limit = int(min(cap, max(32 << 20, 4 * per_row * t_s)))
    return t_s, vmem_limit


# ------------------------------- wrapper ------------------------------------


def embedding_forward(inputs, pos1, pos2, params, position=True,
                      force_dma_gather=False):
    """Pallas equivalent of Embedding.forward (lookup [+ pos lookups + cat])."""
    assert inputs.ndim == 2
    b, s = inputs.shape
    n = b * s

    word_tab = params["word"]
    vw, dw = word_tab.shape
    out_dtype = word_tab.dtype                       # explicit output dtype
    ids_w = inputs.reshape(n, 1).astype(jnp.int32)
    cap = _vmem_cap_bytes()

    if position:
        p1_tab, p2_tab = params["pos1"], params["pos2"]
        vp, dp = p1_tab.shape
        assert p2_tab.shape == (vp, dp)
        tables = [word_tab, p1_tab, p2_tab]
        raw_id_cols = [ids_w,
                       pos1.reshape(n, 1).astype(jnp.int32),
                       pos2.reshape(n, 1).astype(jnp.int32)]
        d_out = dw + 2 * dp
    else:
        tables = [word_tab]
        raw_id_cols = [ids_w]
        d_out = dw

    # Output width padded up to a lane multiple -> unmasked lane-dense stores;
    # the extra columns are sliced off below.
    # TODO(synk): for the mem-bound word-only case, benchmark padded output
    # (+33% HBM writes) vs masked 96-wide stores and keep the faster one.
    d_pad = _round_up(d_out, _LANE)
    word_resident_bytes = _round_up(vw, _LANE) * d_pad * 4
    use_dma = force_dma_gather or word_resident_bytes > cap // 2

    if not use_dma:
        # ---- resident fused one-hot / MXU path (one lane-dense matmul) -----
        blk, row_offs = _build_block_table(tables, d_pad, out_dtype)
        t_s, vlim = _onehot_plan(n, blk.shape[0], d_pad, len(raw_id_cols))
        n_pad = _round_up(n, t_s)
        id_cols = [_pad_id_col(c, n_pad) + off
                   for c, off in zip(raw_id_cols, row_offs)]
        out = _gather_concat_onehot(id_cols, blk, t_s, vlim)
        return out[:n, :d_out].reshape(b, s, d_out)

    # ---- large-vocab path: word table stays in HBM, per-row DMA gather -----
    t_s_w, vlim_w = _dma_plan(n, dw)
    n_pad_w = _round_up(n, t_s_w)
    ids_flat = inputs.reshape(n).astype(jnp.int32)
    if n_pad_w != n:
        ids_flat = jnp.pad(ids_flat, (0, n_pad_w - n))
    w_emb = _gather_rows_dma(ids_flat, word_tab, t_s_w, vlim_w)[:n]
    if not position:
        return w_emb.reshape(b, s, d_out)

    # Tiny position tables stay on the resident one-hot/MXU path.
    dpp = _round_up(2 * dp, _LANE)
    pblk, prow_offs = _build_block_table([p1_tab, p2_tab], dpp, out_dtype)
    t_s_p, vlim_p = _onehot_plan(n, pblk.shape[0], dpp, 2)
    n_pad_p = _round_up(n, t_s_p)
    id_cols = [_pad_id_col(c, n_pad_p) + off
               for c, off in zip(raw_id_cols[1:], prow_offs)]
    p_emb = _gather_concat_onehot(id_cols, pblk, t_s_p, vlim_p)[:n, :2 * dp]
    # Concat in the wrapper (DMA-gathered word rows can't join the fused
    # block-diagonal matmul).
    return jnp.concatenate([w_emb, p_emb], axis=-1).reshape(b, s, d_out)


# --------------------------- pure-JAX reference ------------------------------


def embedding_ref(inputs, pos1, pos2, params, position=True):
    emb = jnp.take(params["word"], inputs, axis=0)
    if position:
        p1 = jnp.take(params["pos1"], pos1, axis=0)
        p2 = jnp.take(params["pos2"], pos2, axis=0)
        emb = jnp.concatenate([emb, p1, p2], axis=-1)
    return emb


# --------------------------------- main --------------------------------------


if __name__ == "__main__":
    # Shapes consistent with the module: batch=2, seq=8, input_size=96,
    # pos_size=16 -> concat feature width 96 + 2*16 = 128 (lane-dense output);
    # n_word=500 (+2 rows incl. padding idx), n_pos=60 (+1 row incl. padding).
    B, S = 2, 8
    n_word, n_pos = 500, 60
    input_size, pos_size = 96, 16

    key = jax.random.PRNGKey(0)
    k_w, k_p1, k_p2, k_in, k_q1, k_q2 = jax.random.split(key, 6)

    # TODO(synk): the module loads pretrained weights from data/word_embed.npy;
    # a deterministic synthetic table is substituted (no file I/O allowed).
    params = {
        "word": jax.random.normal(k_w, (n_word + 2, input_size), jnp.float32) * 0.1,
        "pos1": jax.random.uniform(k_p1, (n_pos + 1, pos_size), jnp.float32,
                                   minval=-0.1, maxval=0.1),
        "pos2": jax.random.uniform(k_p2, (n_pos + 1, pos_size), jnp.float32,
                                   minval=-0.1, maxval=0.1),
    }

    # Index inputs; ranges include the padding indices (n_word+1 / n_pos).
    inputs = jax.random.randint(k_in, (B, S), 0, n_word + 2, jnp.int32)
    pos1 = jax.random.randint(k_q1, (B, S), 0, n_pos + 1, jnp.int32)
    pos2 = jax.random.randint(k_q2, (B, S), 0, n_pos + 1, jnp.int32)

    for position in (True, False):
        ref = embedding_ref(inputs, pos1, pos2, params, position=position)
        # Exercise both the resident one-hot/MXU path and the large-vocab
        # (HBM DMA-gather) path.
        for force_dma in (False, True):
            out = embedding_forward(inputs, pos1, pos2, params,
                                    position=position,
                                    force_dma_gather=force_dma)
            jax.block_until_ready(out)
            assert out.shape == ref.shape, (position, force_dma, out.shape)
            assert jnp.allclose(out, ref, atol=1e-6, rtol=1e-6), (position, force_dma)

    print("KERNEL_OK")
</pallas_src>

<mosaic_0001>
module attributes {stable_mosaic.version = 11 : i64} {
  func.func @_onehot_kernel_3(%arg0: i32, %arg1: memref<16x1xi32, #tpu.memory_space<vmem>>, %arg2: memref<16x1xi32, #tpu.memory_space<vmem>>, %arg3: memref<16x1xi32, #tpu.memory_space<vmem>>, %arg4: memref<768x128xf32, #tpu.memory_space<vmem>>, %arg5: memref<16x128xf32, #tpu.memory_space<vmem>>) attributes {dimension_semantics = [#tpu.dimension_semantics<parallel>], iteration_bounds = array<i64: 1>, scalar_prefetch = 0 : i64, scratch_operands = 0 : i64, tpu.core_type = #tpu.core_type<tc>, window_params = [{transform_indices = @transform_0, window_bounds = array<i64: 16, 1>}, {transform_indices = @transform_1, window_bounds = array<i64: 16, 1>}, {transform_indices = @transform_2, window_bounds = array<i64: 16, 1>}, {pipeline_mode = #tpu.pipeline_mode<synchronous>, transform_indices = @transform_3, window_bounds = array<i64: 768, 128>}, {transform_indices = @transform_4, window_bounds = array<i64: 16, 128>}]} {
    %0 = tpu.iota {dimensions = array<i32: 1>} : vector<16x768xi32>
    %c0 = arith.constant 0 : index
    %c0_0 = arith.constant 0 : index
    %1 = vector.load %arg1[%c0, %c0_0] : memref<16x1xi32, #tpu.memory_space<vmem>>, vector<16x1xi32>
    %2 = vector.broadcast %1 : vector<16x1xi32> to vector<16x768xi32>
    %3 = arith.cmpi eq, %0, %2 : vector<16x768xi32>
    %c0_1 = arith.constant 0 : index
    %c0_2 = arith.constant 0 : index
    %4 = vector.load %arg2[%c0_1, %c0_2] : memref<16x1xi32, #tpu.memory_space<vmem>>, vector<16x1xi32>
    %5 = vector.broadcast %4 : vector<16x1xi32> to vector<16x768xi32>
    %6 = arith.cmpi eq, %0, %5 : vector<16x768xi32>
    %7 = arith.ori %3, %6 : vector<16x768xi1>
    %c0_3 = arith.constant 0 : index
    %c0_4 = arith.constant 0 : index
    %8 = vector.load %arg3[%c0_3, %c0_4] : memref<16x1xi32, #tpu.memory_space<vmem>>, vector<16x1xi32>
    %9 = vector.broadcast %8 : vector<16x1xi32> to vector<16x768xi32>
    %10 = arith.cmpi eq, %0, %9 : vector<16x768xi32>
    %11 = arith.ori %7, %10 : vector<16x768xi1>
    %12 = arith.extui %11 : vector<16x768xi1> to vector<16x768xi32>
    %13 = arith.sitofp %12 : vector<16x768xi32> to vector<16x768xf32>
    %c0_5 = arith.constant 0 : index
    %c0_6 = arith.constant 0 : index
    %14 = vector.load %arg4[%c0_5, %c0_6] : memref<768x128xf32, #tpu.memory_space<vmem>>, vector<768x128xf32>
    %cst = arith.constant dense<0.000000e+00> : vector<16x128xf32>
    %15 = tpu.matmul %13, %14, %cst {dimension_numbers = #tpu.dot_dimension_numbers<[1], [0], [0], [1], [0, 0, 1, 1], [], []>} : vector<16x768xf32>, vector<768x128xf32>, vector<16x128xf32> -> vector<16x128xf32>
    %c0_7 = arith.constant 0 : index
    %c0_8 = arith.constant 0 : index
    %16 = vector.load %arg5[%c0_7, %c0_8] : memref<16x128xf32, #tpu.memory_space<vmem>>, vector<16x128xf32>
    tpu.vector_store %arg5[%c0_7, %c0_8], %15 {strides = array<i32>} : memref<16x128xf32, #tpu.memory_space<vmem>>, vector<16x128xf32>,
    return
  }
  func.func @transform_0(%arg0: i32) -> (i32, i32) {
    %c0_i32 = arith.constant 0 : i32
    %c0_i32_0 = arith.constant 0 : i32
    return %arg0, %c0_i32 : i32, i32
  }
  func.func @transform_1(%arg0: i32) -> (i32, i32) {
    %c0_i32 = arith.constant 0 : i32
    %c0_i32_0 = arith.constant 0 : i32
    return %arg0, %c0_i32 : i32, i32
  }
  func.func @transform_2(%arg0: i32) -> (i32, i32) {
    %c0_i32 = arith.constant 0 : i32
    %c0_i32_0 = arith.constant 0 : i32
    return %arg0, %c0_i32 : i32, i32
  }
  func.func @transform_3(%arg0: i32) -> (i32, i32) {
    %c0_i32 = arith.constant 0 : i32
    %c0_i32_0 = arith.constant 0 : i32
    %c0_i32_1 = arith.constant 0 : i32
    return %c0_i32, %c0_i32_0 : i32, i32
  }
  func.func @transform_4(%arg0: i32) -> (i32, i32) {
    %c0_i32 = arith.constant 0 : i32
    %c0_i32_0 = arith.constant 0 : i32
    return %arg0, %c0_i32 : i32, i32
  }
}

</mosaic_0001>

<llo_original>
// kernel: tpu_custom_call.1
$region0: #{tpu_custom_call.1}
  #allocation0 [shape = 'u32[]', space=smem, size = 0x4, offset = 0x4, fixed_abs, tag = 'smem constant byte address 0x4 - core index']
  #allocation1 [shape = 'u32[144,128]{1,0:T(1,128)}', space=vmem, size = 0x12000, scoped, tag = 'internal scratch']
  %s0 = inlined_call_operand.vmem [shape: s32[16,1], index: 0, kind: input, shape index: {}]
  %s1 = inlined_call_operand.vmem [shape: s32[16,1], index: 1, kind: input, shape index: {}]
  %s2 = inlined_call_operand.vmem [shape: s32[16,1], index: 2, kind: input, shape index: {}]
  %s3 = inlined_call_operand.hbm [shape: f32[768,128], index: 3, kind: input, shape index: {}]
  %s4 = inlined_call_operand.hbm [shape: f32[16,128], index: 4, kind: output, shape index: {}]
  %s5 = sld [smem:[#allocation0]]
  $region30: #{tpu_custom_call.1} parent=0
    _
  %s7 = ssub.s32 1, %s5
  %s8 = scalar_select 0, %s7, %s5
  $region1: #{tpu_custom_call.1} parent=0
    #allocation2 [shape = 'u8[393216]{0}', space=vmem, size = 0x60000, scoped, tag = 'input window, operand 3, single buffered']
    #allocation3 [shape = 's32[1]{0}', space=sflag, size = 0x4, scoped, tag = 'scoped memory for tpu_custom_call.1']
    #allocation4 [shape = 's32[1]{0}', space=sflag, size = 0x4, scoped, tag = 'scoped memory for tpu_custom_call.1']
    #allocation5 [shape = 'u8[8192]{0}', space=vmem, size = 0x2000, scoped, tag = 'output window, operand 0, single buffered']
    %9 = vsyncpa [#allocation3], 0
    %10 = vsyncpa [#allocation4], 0
    // Predicated region
    $region2: #{tpu_custom_call.1} parent=1 // pred_check
      _
    $region3: #{tpu_custom_call.1} parent=1 // pred_check_branch
      %12 = sbr.rel (0) target = $region5
    $region4: #{tpu_custom_call.1} parent=1 // pred_region
      _
    $region5: #{tpu_custom_call.1} parent=1 // pred_fallthru
      _
    // Predicated region
    $region6: #{tpu_custom_call.1} parent=1 // pred_check
      _
    $region7: #{tpu_custom_call.1} parent=1 // pred_check_branch
      %14 = sbr.rel (0) target = $region9
    $region8: #{tpu_custom_call.1} parent=1 // pred_region
      _
    $region9: #{tpu_custom_call.1} parent=1 // pred_fallthru
      _
    // Predicated region
    $region10: #{tpu_custom_call.1} parent=1 // pred_check
      _
    $region11: #{tpu_custom_call.1} parent=1 // pred_check_branch
      %16 = sbr.rel (0) target = $region13
    $region12: #{tpu_custom_call.1} parent=1 // pred_region
      _
    $region13: #{tpu_custom_call.1} parent=1 // pred_fallthru
      _
    // Predicated region
    $region14: #{tpu_custom_call.1} parent=1 // pred_check
      _
    $region15: #{tpu_custom_call.1} parent=1 // pred_check_branch
      %18 = sbr.rel (0) target = $region17
    $region16: #{tpu_custom_call.1} parent=1 // pred_region
      %s20 = ssub.s32 12288, 12288
      %21 = vsyncadd [#allocation3], %s20
      %s22 = sshll.u32 [#allocation2], 4
      %s23 = int_to_ptr.vmem [resolvable:$true] %s22
      %28 = dma.hbm_to_vmem [thread:$0]  %s3, 12288, %s23, [#allocation3], 128, 128, 8
    $region17: #{tpu_custom_call.1} parent=1 // pred_fallthru
      _
    // Predicated region
    $region18: #{tpu_custom_call.1} parent=1 // pred_check
      _
    $region19: #{tpu_custom_call.1} parent=1 // pred_check_branch
      %30 = sbr.rel (0) target = $region21
    $region20: #{tpu_custom_call.1} parent=1 // pred_region
      %31 = dma.done [#allocation3], 12288
    $region21: #{tpu_custom_call.1} parent=1 // pred_fallthru
      _
    %v32 = vlaneseq
    %v33 = vand.u32 %v32, 127
    %v34 = vadd.s32 %v33, 128
    %v35 = vadd.s32 %v33, 256
    %v36 = vadd.s32 %v33, 384
    %v37 = vadd.s32 %v33, 512
    %v38 = vadd.s32 %v33, 640
    %v39 = vld [vmem:[%s0] sm:$0xff]
    %v40 = vld [vmem:[%s0 + $0x8] sm:$0xff]
    %41 = vset.pattern.permute.xlu0 0
    %42 = vperm.xlu0 %41, %v39
    %v43 = vpop.permute.xlu0 %42
    %44 = vset.pattern.permute.xlu0 0
    %45 = vperm.xlu0 %44, %v40
    %v46 = vpop.permute.xlu0 %45
    %vm47 = vcmp.eq.s32.totalorder %v33, %v43
    %vm48 = vcmp.eq.s32.totalorder %v34, %v43
    %vm49 = vcmp.eq.s32.totalorder %v35, %v43
    %vm50 = vcmp.eq.s32.totalorder %v36, %v43
    %vm51 = vcmp.eq.s32.totalorder %v37, %v43
    %vm52 = vcmp.eq.s32.totalorder %v38, %v43
    %vm53 = vcmp.eq.s32.totalorder %v33, %v46
    %vm54 = vcmp.eq.s32.totalorder %v34, %v46
    %vm55 = vcmp.eq.s32.totalorder %v35, %v46
    %vm56 = vcmp.eq.s32.totalorder %v36, %v46
    %vm57 = vcmp.eq.s32.totalorder %v37, %v46
    %vm58 = vcmp.eq.s32.totalorder %v38, %v46
    %v59 = vld [vmem:[%s1] sm:$0xff]
    %v60 = vld [vmem:[%s1 + $0x8] sm:$0xff]
    %61 = vset.pattern.permute.xlu0 0
    %62 = vperm.xlu0 %61, %v59
    %v63 = vpop.permute.xlu0 %62
    %64 = vset.pattern.permute.xlu0 0
    %65 = vperm.xlu0 %64, %v60
    %v66 = vpop.permute.xlu0 %65
    %vm67 = vcmp.eq.s32.totalorder %v33, %v63
    %vm68 = vcmp.eq.s32.totalorder %v34, %v63
    %vm69 = vcmp.eq.s32.totalorder %v35, %v63
    %vm70 = vcmp.eq.s32.totalorder %v36, %v63
    %vm71 = vcmp.eq.s32.totalorder %v37, %v63
    %vm72 = vcmp.eq.s32.totalorder %v38, %v63
    %vm73 = vcmp.eq.s32.totalorder %v33, %v66
    %vm74 = vcmp.eq.s32.totalorder %v34, %v66
    %vm75 = vcmp.eq.s32.totalorder %v35, %v66
    %vm76 = vcmp.eq.s32.totalorder %v36, %v66
    %vm77 = vcmp.eq.s32.totalorder %v37, %v66
    %vm78 = vcmp.eq.s32.totalorder %v38, %v66
    %vm79 = vmor %vm47, %vm67
    %vm80 = vmor %vm48, %vm68
    %vm81 = vmor %vm49, %vm69
    %vm82 = vmor %vm50, %vm70
    %vm83 = vmor %vm51, %vm71
    %vm84 = vmor %vm52, %vm72
    %vm85 = vmor %vm53, %vm73
    %vm86 = vmor %vm54, %vm74
    %vm87 = vmor %vm55, %vm75
    %vm88 = vmor %vm56, %vm76
    %vm89 = vmor %vm57, %vm77
    %vm90 = vmor %vm58, %vm78
    %v91 = vld [vmem:[%s2] sm:$0xff]
    %v92 = vld [vmem:[%s2 + $0x8] sm:$0xff]
    %93 = vset.pattern.permute.xlu0 0
    %94 = vperm.xlu0 %93, %v91
    %v95 = vpop.permute.xlu0 %94
    %96 = vset.pattern.permute.xlu0 0
    %97 = vperm.xlu0 %96, %v92
    %v98 = vpop.permute.xlu0 %97
    %vm99 = vcmp.eq.s32.totalorder %v33, %v95
    %vm100 = vcmp.eq.s32.totalorder %v34, %v95
    %vm101 = vcmp.eq.s32.totalorder %v35, %v95
    %vm102 = vcmp.eq.s32.totalorder %v36, %v95
    %vm103 = vcmp.eq.s32.totalorder %v37, %v95
    %vm104 = vcmp.eq.s32.totalorder %v38, %v95
    %vm105 = vcmp.eq.s32.totalorder %v33, %v98
    %vm106 = vcmp.eq.s32.totalorder %v34, %v98
    %vm107 = vcmp.eq.s32.totalorder %v35, %v98
    %vm108 = vcmp.eq.s32.totalorder %v36, %v98
    %vm109 = vcmp.eq.s32.totalorder %v37, %v98
    %vm110 = vcmp.eq.s32.totalorder %v38, %v98
    %vm111 = vmor %vm79, %vm99
    %vm112 = vmor %vm80, %vm100
    %vm113 = vmor %vm81, %vm101
    %vm114 = vmor %vm82, %vm102
    %vm115 = vmor %vm83, %vm103
    %vm116 = vmor %vm84, %vm104
    %vm117 = vmor %vm85, %vm105
    %vm118 = vmor %vm86, %vm106
    %vm119 = vmor %vm87, %vm107
    %vm120 = vmor %vm88, %vm108
    %vm121 = vmor %vm89, %vm109
    %vm122 = vmor %vm90, %vm110
    %v123 = vsel %vm111, 1, 0
    %v124 = vsel %vm112, 1, 0
    %v125 = vsel %vm113, 1, 0
    %v126 = vsel %vm114, 1, 0
    %v127 = vsel %vm115, 1, 0
    %v128 = vsel %vm116, 1, 0
    %v129 = vsel %vm117, 1, 0
    %v130 = vsel %vm118, 1, 0
    %v131 = vsel %vm119, 1, 0
    %v132 = vsel %vm120, 1, 0
    %v133 = vsel %vm121, 1, 0
    %v134 = vsel %vm122, 1, 0
    %v135 = vcvt.s32.f32 %v123
    %v136 = vcvt.s32.f32 %v124
    %v137 = vcvt.s32.f32 %v125
    %v138 = vcvt.s32.f32 %v126
    %v139 = vcvt.s32.f32 %v127
    %v140 = vcvt.s32.f32 %v128
    %v141 = vcvt.s32.f32 %v129
    %v142 = vcvt.s32.f32 %v130
    %v143 = vcvt.s32.f32 %v131
    %v144 = vcvt.s32.f32 %v132
    %v145 = vcvt.s32.f32 %v133
    %v146 = vcvt.s32.f32 %v134
    %v147 = vld [vmem:[#allocation2] sm:$0xff]
    %v148 = vld [vmem:[#allocation2 + $0x8] sm:$0xff]
    %v149 = vld [vmem:[#allocation2 + $0x10] sm:$0xff]
    %v150 = vld [vmem:[#allocation2 + $0x18] sm:$0xff]
    %v151 = vld [vmem:[#allocation2 + $0x20] sm:$0xff]
    %v152 = vld [vmem:[#allocation2 + $0x28] sm:$0xff]
    %v153 = vld [vmem:[#allocation2 + $0x30] sm:$0xff]
    %v154 = vld [vmem:[#allocation2 + $0x38] sm:$0xff]
    %v155 = vld [vmem:[#allocation2 + $0x40] sm:$0xff]
    %v156 = vld [vmem:[#allocation2 + $0x48] sm:$0xff]
    %v157 = vld [vmem:[#allocation2 + $0x50] sm:$0xff]
    %v158 = vld [vmem:[#allocation2 + $0x58] sm:$0xff]
    %v159 = vld [vmem:[#allocation2 + $0x60] sm:$0xff]
    %v160 = vld [vmem:[#allocation2 + $0x68] sm:$0xff]
    %v161 = vld [vmem:[#allocation2 + $0x70] sm:$0xff]
    %v162 = vld [vmem:[#allocation2 + $0x78] sm:$0xff]
    %v163 = vld [vmem:[#allocation2 + $0x80] sm:$0xff]
    %v164 = vld [vmem:[#allocation2 + $0x88] sm:$0xff]
    %v165 = vld [vmem:[#allocation2 + $0x90] sm:$0xff]
    %v166 = vld [vmem:[#allocation2 + $0x98] sm:$0xff]
    %v167 = vld [vmem:[#allocation2 + $0xa0] sm:$0xff]
    %v168 = vld [vmem:[#allocation2 + $0xa8] sm:$0xff]
    %v169 = vld [vmem:[#allocation2 + $0xb0] sm:$0xff]
    %v170 = vld [vmem:[#allocation2 + $0xb8] sm:$0xff]
    %v171 = vld [vmem:[#allocation2 + $0xc0] sm:$0xff]
    %v172 = vld [vmem:[#allocation2 + $0xc8] sm:$0xff]
    %v173 = vld [vmem:[#allocation2 + $0xd0] sm:$0xff]
    %v174 = vld [vmem:[#allocation2 + $0xd8] sm:$0xff]
    %v175 = vld [vmem:[#allocation2 + $0xe0] sm:$0xff]
    %v176 = vld [vmem:[#allocation2 + $0xe8] sm:$0xff]
    %v177 = vld [vmem:[#allocation2 + $0xf0] sm:$0xff]
    %v178 = vld [vmem:[#allocation2 + $0xf8] sm:$0xff]
    %v179 = vld [vmem:[#allocation2 + $0x100] sm:$0xff]
    %v180 = vld [vmem:[#allocation2 + $0x108] sm:$0xff]
    %v181 = vld [vmem:[#allocation2 + $0x110] sm:$0xff]
    %v182 = vld [vmem:[#allocation2 + $0x118] sm:$0xff]
    %v183 = vld [vmem:[#allocation2 + $0x120] sm:$0xff]
    %v184 = vld [vmem:[#allocation2 + $0x128] sm:$0xff]
    %v185 = vld [vmem:[#allocation2 + $0x130] sm:$0xff]
    %v186 = vld [vmem:[#allocation2 + $0x138] sm:$0xff]
    %v187 = vld [vmem:[#allocation2 + $0x140] sm:$0xff]
    %v188 = vld [vmem:[#allocation2 + $0x148] sm:$0xff]
    %v189 = vld [vmem:[#allocation2 + $0x150] sm:$0xff]
    %v190 = vld [vmem:[#allocation2 + $0x158] sm:$0xff]
    %v191 = vld [vmem:[#allocation2 + $0x160] sm:$0xff]
    %v192 = vld [vmem:[#allocation2 + $0x168] sm:$0xff]
    %v193 = vld [vmem:[#allocation2 + $0x170] sm:$0xff]
    %v194 = vld [vmem:[#allocation2 + $0x178] sm:$0xff]
    %v195 = vld [vmem:[#allocation2 + $0x180] sm:$0xff]
    %v196 = vld [vmem:[#allocation2 + $0x188] sm:$0xff]
    %v197 = vld [vmem:[#allocation2 + $0x190] sm:$0xff]
    %v198 = vld [vmem:[#allocation2 + $0x198] sm:$0xff]
    %v199 = vld [vmem:[#allocation2 + $0x1a0] sm:$0xff]
    %v200 = vld [vmem:[#allocation2 + $0x1a8] sm:$0xff]
    %v201 = vld [vmem:[#allocation2 + $0x1b0] sm:$0xff]
    %v202 = vld [vmem:[#allocation2 + $0x1b8] sm:$0xff]
    %v203 = vld [vmem:[#allocation2 + $0x1c0] sm:$0xff]
    %v204 = vld [vmem:[#allocation2 + $0x1c8] sm:$0xff]
    %v205 = vld [vmem:[#allocation2 + $0x1d0] sm:$0xff]
    %v206 = vld [vmem:[#allocation2 + $0x1d8] sm:$0xff]
    %v207 = vld [vmem:[#allocation2 + $0x1e0] sm:$0xff]
    %v208 = vld [vmem:[#allocation2 + $0x1e8] sm:$0xff]
    %v209 = vld [vmem:[#allocation2 + $0x1f0] sm:$0xff]
    %v210 = vld [vmem:[#allocation2 + $0x1f8] sm:$0xff]
    %v211 = vld [vmem:[#allocation2 + $0x200] sm:$0xff]
    %v212 = vld [vmem:[#allocation2 + $0x208] sm:$0xff]
    %v213 = vld [vmem:[#allocation2 + $0x210] sm:$0xff]
    %v214 = vld [vmem:[#allocation2 + $0x218] sm:$0xff]
    %v215 = vld [vmem:[#allocation2 + $0x220] sm:$0xff]
    %v216 = vld [vmem:[#allocation2 + $0x228] sm:$0xff]
    %v217 = vld [vmem:[#allocation2 + $0x230] sm:$0xff]
    %v218 = vld [vmem:[#allocation2 + $0x238] sm:$0xff]
    %v219 = vld [vmem:[#allocation2 + $0x240] sm:$0xff]
    %v220 = vld [vmem:[#allocation2 + $0x248] sm:$0xff]
    %v221 = vld [vmem:[#allocation2 + $0x250] sm:$0xff]
    %v222 = vld [vmem:[#allocation2 + $0x258] sm:$0xff]
    %v223 = vld [vmem:[#allocation2 + $0x260] sm:$0xff]
    %v224 = vld [vmem:[#allocation2 + $0x268] sm:$0xff]
    %v225 = vld [vmem:[#allocation2 + $0x270] sm:$0xff]
    %v226 = vld [vmem:[#allocation2 + $0x278] sm:$0xff]
    %v227 = vld [vmem:[#allocation2 + $0x280] sm:$0xff]
    %v228 = vld [vmem:[#allocation2 + $0x288] sm:$0xff]
    %v229 = vld [vmem:[#allocation2 + $0x290] sm:$0xff]
    %v230 = vld [vmem:[#allocation2 + $0x298] sm:$0xff]
    %v231 = vld [vmem:[#allocation2 + $0x2a0] sm:$0xff]
    %v232 = vld [vmem:[#allocation2 + $0x2a8] sm:$0xff]
    %v233 = vld [vmem:[#allocation2 + $0x2b0] sm:$0xff]
    %v234 = vld [vmem:[#allocation2 + $0x2b8] sm:$0xff]
    %v235 = vld [vmem:[#allocation2 + $0x2c0] sm:$0xff]
    %v236 = vld [vmem:[#allocation2 + $0x2c8] sm:$0xff]
    %v237 = vld [vmem:[#allocation2 + $0x2d0] sm:$0xff]
    %v238 = vld [vmem:[#allocation2 + $0x2d8] sm:$0xff]
    %v239 = vld [vmem:[#allocation2 + $0x2e0] sm:$0xff]
    %v240 = vld [vmem:[#allocation2 + $0x2e8] sm:$0xff]
    %v241 = vld [vmem:[#allocation2 + $0x2f0] sm:$0xff]
    %v242 = vld [vmem:[#allocation2 + $0x2f8] sm:$0xff]
    %243 = vmatprep.subr.mxu0 0.0
    %244 = vmatpush1.msra.mxu0 %v147
    %245 = vmatprep.subr.mxu0 0.0
    %246 = vmatpush1.msra.mxu0 %v148
    %247 = vmatprep.subr.mxu0 0.0
    %248 = vmatpush1.msra.mxu0 %v149
    %249 = vmatprep.subr.mxu0 0.0
    %250 = vmatpush1.msra.mxu0 %v150
    %251 = vmatprep.subr.mxu0 0.0
    %252 = vmatpush1.msra.mxu0 %v151
    %253 = vmatprep.subr.mxu0 0.0
    %254 = vmatpush1.msra.mxu0 %v152
    %255 = vmatprep.subr.mxu0 0.0
    %256 = vmatpush1.msra.mxu0 %v153
    %257 = vmatprep.subr.mxu0 0.0
    %258 = vmatpush1.msra.mxu0 %v154
    %259 = vmatprep.subr.mxu0 0.0
    %260 = vmatpush1.msra.mxu0 %v155
    %261 = vmatprep.subr.mxu0 0.0
    %262 = vmatpush1.msra.mxu0 %v156
    %263 = vmatprep.subr.mxu0 0.0
    %264 = vmatpush1.msra.mxu0 %v157
    %265 = vmatprep.subr.mxu0 0.0
    %266 = vmatpush1.msra.mxu0 %v158
    %267 = vmatprep.subr.mxu0 0.0
    %268 = vmatpush1.msra.mxu0 %v159
    %269 = vmatprep.subr.mxu0 0.0
    %270 = vmatpush1.msra.mxu0 %v160
    %271 = vmatprep.subr.mxu0 0.0
    %272 = vmatpush1.msra.mxu0 %v161
    %273 = vmatprep.subr.mxu0 0.0
    %274 = vmatpush1.msra.mxu0 %v162
    %275 = vmatprep.subr.mxu0 0.0
    %276 = vmatpush1.msra.mxu0 %v163
    %277 = vmatprep.subr.mxu0 0.0
    %278 = vmatpush1.msra.mxu0 %v164
    %279 = vmatprep.subr.mxu0 0.0
    %280 = vmatpush1.msra.mxu0 %v165
    %281 = vmatprep.subr.mxu0 0.0
    %282 = vmatpush1.msra.mxu0 %v166
    %283 = vmatprep.subr.mxu0 0.0
    %284 = vmatpush1.msra.mxu0 %v167
    %285 = vmatprep.subr.mxu0 0.0
    %286 = vmatpush1.msra.mxu0 %v168
    %287 = vmatprep.subr.mxu0 0.0
    %288 = vmatpush1.msra.mxu0 %v169
    %289 = vmatprep.subr.mxu0 0.0
    %290 = vmatpush1.msra.mxu0 %v170
    %291 = vmatprep.subr.mxu0 0.0
    %292 = vmatpush1.msra.mxu0 %v171
    %293 = vmatprep.subr.mxu0 0.0
    %294 = vmatpush1.msra.mxu0 %v172
    %295 = vmatprep.subr.mxu0 0.0
    %296 = vmatpush1.msra.mxu0 %v173
    %297 = vmatprep.subr.mxu0 0.0
    %298 = vmatpush1.msra.mxu0 %v174
    %299 = vmatprep.subr.mxu0 0.0
    %300 = vmatpush1.msra.mxu0 %v175
    %301 = vmatprep.subr.mxu0 0.0
    %302 = vmatpush1.msra.mxu0 %v176
    %303 = vmatprep.subr.mxu0 0.0
    %304 = vmatpush1.msra.mxu0 %v177
    %305 = vmatprep.subr.mxu0 0.0
    %306 = vmatpush1.msra.mxu0 %v178
    %307 = vmatprep.mubr.f32.mxu0 %v136
    %308 = vmatmul.mubr.f32.gmra.mrb[0].mxu0 %v135
    %v309 = vpop.f32.mrb[0].mxu0
    %v310 = vadd.f32 0.0, %v309
    %v311 = vpop.f32.mrb[0].mxu0
    %312 = vmatprep.mubr.f32.mxu0 %v142
    %313 = vmatmul.mubr.f32.gmra.mrb[0].mxu0 %v141
    %v314 = vpop.f32.mrb[0].mxu0
    %v315 = vadd.f32 0.0, %v314
    %v316 = vpop.f32.mrb[0].mxu0
    %317 = vdwg.mxu0
    %318 = vmatprep.subr.mxu0 0.0
    %319 = vmatpush1.msra.mxu0 %v179
    %320 = vmatprep.subr.mxu0 0.0
    %321 = vmatpush1.msra.mxu0 %v180
    %322 = vmatprep.subr.mxu0 0.0
    %323 = vmatpush1.msra.mxu0 %v181
    %324 = vmatprep.subr.mxu0 0.0
    %325 = vmatpush1.msra.mxu0 %v182
    %326 = vmatprep.subr.mxu0 0.0
    %327 = vmatpush1.msra.mxu0 %v183
    %328 = vmatprep.subr.mxu0 0.0
    %329 = vmatpush1.msra.mxu0 %v184
    %330 = vmatprep.subr.mxu0 0.0
    %331 = vmatpush1.msra.mxu0 %v185
    %332 = vmatprep.subr.mxu0 0.0
    %333 = vmatpush1.msra.mxu0 %v186
    %334 = vmatprep.subr.mxu0 0.0
    %335 = vmatpush1.msra.mxu0 %v187
    %336 = vmatprep.subr.mxu0 0.0
    %337 = vmatpush1.msra.mxu0 %v188
    %338 = vmatprep.subr.mxu0 0.0
    %339 = vmatpush1.msra.mxu0 %v189
    %340 = vmatprep.subr.mxu0 0.0
    %341 = vmatpush1.msra.mxu0 %v190
    %342 = vmatprep.subr.mxu0 0.0
    %343 = vmatpush1.msra.mxu0 %v191
    %344 = vmatprep.subr.mxu0 0.0
    %345 = vmatpush1.msra.mxu0 %v192
    %346 = vmatprep.subr.mxu0 0.0
    %347 = vmatpush1.msra.mxu0 %v193
    %348 = vmatprep.subr.mxu0 0.0
    %349 = vmatpush1.msra.mxu0 %v194
    %350 = vmatprep.subr.mxu0 0.0
    %351 = vmatpush1.msra.mxu0 %v195
    %352 = vmatprep.subr.mxu0 0.0
    %353 = vmatpush1.msra.mxu0 %v196
    %354 = vmatprep.subr.mxu0 0.0
    %355 = vmatpush1.msra.mxu0 %v197
    %356 = vmatprep.subr.mxu0 0.0
    %357 = vmatpush1.msra.mxu0 %v198
    %358 = vmatprep.subr.mxu0 0.0
    %359 = vmatpush1.msra.mxu0 %v199
    %360 = vmatprep.subr.mxu0 0.0
    %361 = vmatpush1.msra.mxu0 %v200
    %362 = vmatprep.subr.mxu0 0.0
    %363 = vmatpush1.msra.mxu0 %v201
    %364 = vmatprep.subr.mxu0 0.0
    %365 = vmatpush1.msra.mxu0 %v202
    %366 = vmatprep.subr.mxu0 0.0
    %367 = vmatpush1.msra.mxu0 %v203
    %368 = vmatprep.subr.mxu0 0.0
    %369 = vmatpush1.msra.mxu0 %v204
    %370 = vmatprep.subr.mxu0 0.0
    %371 = vmatpush1.msra.mxu0 %v205
    %372 = vmatprep.subr.mxu0 0.0
    %373 = vmatpush1.msra.mxu0 %v206
    %374 = vmatprep.subr.mxu0 0.0
    %375 = vmatpush1.msra.mxu0 %v207
    %376 = vmatprep.subr.mxu0 0.0
    %377 = vmatpush1.msra.mxu0 %v208
    %378 = vmatprep.subr.mxu0 0.0
    %379 = vmatpush1.msra.mxu0 %v209
    %380 = vmatprep.subr.mxu0 0.0
    %381 = vmatpush1.msra.mxu0 %v210
    %382 = vmatprep.mubr.f32.mxu0 %v138
    %383 = vmatmul.mubr.f32.gmra.mrb[0].mxu0 %v137
    %v384 = vpop.f32.mrb[0].mxu0
    %v385 = vadd.f32 %v310, %v384
    %v386 = vpop.f32.mrb[0].mxu0
    %387 = vmatprep.mubr.f32.mxu0 %v144
    %388 = vmatmul.mubr.f32.gmra.mrb[0].mxu0 %v143
    %v389 = vpop.f32.mrb[0].mxu0
    %v390 = vadd.f32 %v315, %v389
    %v391 = vpop.f32.mrb[0].mxu0
    %392 = vdwg.mxu0
    %393 = vmatprep.subr.mxu0 0.0
    %394 = vmatpush1.msra.mxu0 %v211
    %395 = vmatprep.subr.mxu0 0.0
    %396 = vmatpush1.msra.mxu0 %v212
    %397 = vmatprep.subr.mxu0 0.0
    %398 = vmatpush1.msra.mxu0 %v213
    %399 = vmatprep.subr.mxu0 0.0
    %400 = vmatpush1.msra.mxu0 %v214
    %401 = vmatprep.subr.mxu0 0.0
    %402 = vmatpush1.msra.mxu0 %v215
    %403 = vmatprep.subr.mxu0 0.0
    %404 = vmatpush1.msra.mxu0 %v216
    %405 = vmatprep.subr.mxu0 0.0
    %406 = vmatpush1.msra.mxu0 %v217
    %407 = vmatprep.subr.mxu0 0.0
    %408 = vmatpush1.msra.mxu0 %v218
    %409 = vmatprep.subr.mxu0 0.0
    %410 = vmatpush1.msra.mxu0 %v219
    %411 = vmatprep.subr.mxu0 0.0
    %412 = vmatpush1.msra.mxu0 %v220
    %413 = vmatprep.subr.mxu0 0.0
    %414 = vmatpush1.msra.mxu0 %v221
    %415 = vmatprep.subr.mxu0 0.0
    %416 = vmatpush1.msra.mxu0 %v222
    %417 = vmatprep.subr.mxu0 0.0
    %418 = vmatpush1.msra.mxu0 %v223
    %419 = vmatprep.subr.mxu0 0.0
    %420 = vmatpush1.msra.mxu0 %v224
    %421 = vmatprep.subr.mxu0 0.0
    %422 = vmatpush1.msra.mxu0 %v225
    %423 = vmatprep.subr.mxu0 0.0
    %424 = vmatpush1.msra.mxu0 %v226
    %425 = vmatprep.subr.mxu0 0.0
    %426 = vmatpush1.msra.mxu0 %v227
    %427 = vmatprep.subr.mxu0 0.0
    %428 = vmatpush1.msra.mxu0 %v228
    %429 = vmatprep.subr.mxu0 0.0
    %430 = vmatpush1.msra.mxu0 %v229
    %431 = vmatprep.subr.mxu0 0.0
    %432 = vmatpush1.msra.mxu0 %v230
    %433 = vmatprep.subr.mxu0 0.0
    %434 = vmatpush1.msra.mxu0 %v231
    %435 = vmatprep.subr.mxu0 0.0
    %436 = vmatpush1.msra.mxu0 %v232
    %437 = vmatprep.subr.mxu0 0.0
    %438 = vmatpush1.msra.mxu0 %v233
    %439 = vmatprep.subr.mxu0 0.0
    %440 = vmatpush1.msra.mxu0 %v234
    %441 = vmatprep.subr.mxu0 0.0
    %442 = vmatpush1.msra.mxu0 %v235
    %443 = vmatprep.subr.mxu0 0.0
    %444 = vmatpush1.msra.mxu0 %v236
    %445 = vmatprep.subr.mxu0 0.0
    %446 = vmatpush1.msra.mxu0 %v237
    %447 = vmatprep.subr.mxu0 0.0
    %448 = vmatpush1.msra.mxu0 %v238
    %449 = vmatprep.subr.mxu0 0.0
    %450 = vmatpush1.msra.mxu0 %v239
    %451 = vmatprep.subr.mxu0 0.0
    %452 = vmatpush1.msra.mxu0 %v240
    %453 = vmatprep.subr.mxu0 0.0
    %454 = vmatpush1.msra.mxu0 %v241
    %455 = vmatprep.subr.mxu0 0.0
    %456 = vmatpush1.msra.mxu0 %v242
    %457 = vmatprep.mubr.f32.mxu0 %v140
    %458 = vmatmul.mubr.f32.gmra.mrb[0].mxu0 %v139
    %v459 = vpop.f32.mrb[0].mxu0
    %v460 = vadd.f32 %v385, %v459
    %v461 = vpop.f32.mrb[0].mxu0
    %462 = vmatprep.mubr.f32.mxu0 %v146
    %463 = vmatmul.mubr.f32.gmra.mrb[0].mxu0 %v145
    %v464 = vpop.f32.mrb[0].mxu0
    %v465 = vadd.f32 %v390, %v464
    %v466 = vpop.f32.mrb[0].mxu0
    %467 = vdwg.mxu0
    %468 = vst [vmem:[#allocation5] sm:$0xff] %v460
    %469 = vst [vmem:[#allocation5 + $0x8] sm:$0xff] %v465
    // Predicated region
    $region22: #{tpu_custom_call.1} parent=1 // pred_check
      _
    $region23: #{tpu_custom_call.1} parent=1 // pred_check_branch
      %471 = sbr.rel (0) target = $region25
    $region24: #{tpu_custom_call.1} parent=1 // pred_region
      %s473 = ssub.s32 256, 256
      %474 = vsyncadd [#allocation4], %s473
      %s475 = sshll.u32 [#allocation5], 4
      %s476 = int_to_ptr.vmem [resolvable:$true] %s475
      %481 = dma.vmem_to_hbm [thread:$0]  %s476, 256, %s4, [#allocation4], 128, 128, 8
    $region25: #{tpu_custom_call.1} parent=1 // pred_fallthru
      _
    // Predicated region
    $region26: #{tpu_custom_call.1} parent=1 // pred_check
      _
    $region27: #{tpu_custom_call.1} parent=1 // pred_check_branch
      %483 = sbr.rel (0) target = $region29
    $region28: #{tpu_custom_call.1} parent=1 // pred_region
      %484 = dma.done [#allocation4], 256
    $region29: #{tpu_custom_call.1} parent=1 // pred_fallthru
      _
    %485 = vsyncpa [#allocation3], 1
    %486 = vsyncpa [#allocation4], 1

</llo_original>
